<compile_context>
chip_gen: v5e
topology: v5e:2x2
jax: 0.10.0
libtpu: 0.0.40
codegen_flags: <defaults>
</compile_context>

<pallas_src>
import functools

import jax
import jax.numpy as jnp
from jax.experimental import pallas as pl
from jax.experimental.pallas import tpu as pltpu


def _gcn_stack_kernel(a_ref, x_ref, w_ref, b_ref, o_ref, h_ref, hw_ref, *, tm):
    """Fused GCN stack.

    a_ref : [TM, N]   bf16  normalized-adjacency row tile (streamed per (layer,row))
    x_ref : [N, F]    f32   input node features (resident; constant index_map)
    w_ref : [1, F, F] bf16  weight of the current layer
    b_ref : [1, 1, F] f32   bias of the current layer
    o_ref : [TM, F]   f32   output row tile (last layer's write wins)
    h_ref : [N, F]    f32   persistent node features across layers (VMEM scratch)
    hw_ref: [N, F]    f32   per-layer H @ W_l (VMEM scratch)
    """
    layer = pl.program_id(0)
    row = pl.program_id(1)

    # Load the input features into the persistent H buffer once.
    @pl.when(jnp.logical_and(layer == 0, row == 0))
    def _init_h():
        h_ref[...] = x_ref[...]

    # Feature transform HW = H @ W_l: once per layer (needs the full, old H).
    @pl.when(row == 0)
    def _feature_transform():
        hw_ref[...] = jnp.dot(
            h_ref[...].astype(jnp.bfloat16),
            w_ref[0],
            preferred_element_type=jnp.float32,
        )

    # Row-tiled neighborhood aggregation on the MXU (bf16 operands, f32 accumulation).
    agg = jnp.dot(
        a_ref[...],
        hw_ref[...].astype(jnp.bfloat16),
        preferred_element_type=jnp.float32,
    )

    r0 = pl.multiple_of(row * tm, tm)
    h_tile = h_ref[pl.ds(r0, tm), :]                       # old H rows (residual)
    new_tile = jnp.maximum(agg + b_ref[0], 0.0) + h_tile   # bias + ReLU + residual

    # In-place update of the persistent H is safe: HW was computed from the old H
    # before any row of this layer was modified, and this tile only touches its rows.
    h_ref[pl.ds(r0, tm), :] = new_tile
    o_ref[...] = new_tile.astype(o_ref.dtype)


def gcn_forward(a_norm, features, weights, biases, *, tm=128):
    """GCN.forward: residual stack of GraphConv layers, fused into one pallas_call.

    a_norm  : [N, N]      f32 normalized adjacency (cast to bf16 for the MXU)
    features: [N, F]      f32
    weights : [L, F, F]   f32 (cast to bf16 for the MXU)
    biases  : [L, 1, F]   f32
    """
    n, f = features.shape
    n_layers = weights.shape[0]
    assert n % tm == 0, "number of nodes must be a multiple of the row tile"
    n_row_tiles = n // tm

    a_bf16 = a_norm.astype(jnp.bfloat16)
    w_bf16 = weights.astype(jnp.bfloat16)

    kernel = functools.partial(_gcn_stack_kernel, tm=tm)

    return pl.pallas_call(
        kernel,
        out_shape=jax.ShapeDtypeStruct((n, f), jnp.float32),
        grid_spec=pltpu.PrefetchScalarGridSpec(
            num_scalar_prefetch=0,
            grid=(n_layers, n_row_tiles),
            in_specs=[
                # adjacency row tile: streamed & auto double-buffered
                pl.BlockSpec((tm, n), lambda l, r: (r, 0)),
                # features: constant index -> DMA'd once, stays resident
                pl.BlockSpec((n, f), lambda l, r: (0, 0)),
                # per-layer weight / bias: next layer prefetched during current layer
                pl.BlockSpec((1, f, f), lambda l, r: (l, 0, 0)),
                pl.BlockSpec((1, 1, f), lambda l, r: (l, 0, 0)),
            ],
            out_specs=pl.BlockSpec((tm, f), lambda l, r: (r, 0)),
            scratch_shapes=[
                pltpu.VMEM((n, f), jnp.float32),   # persistent H
                pltpu.VMEM((n, f), jnp.float32),   # per-layer H @ W_l
            ],
        ),
        compiler_params=pltpu.CompilerParams(
            dimension_semantics=("arbitrary", "arbitrary"),
            vmem_limit_bytes=32 * 1024 * 1024,
        ),
    )(a_bf16, features, w_bf16, biases)


def xavier_uniform(key, shape, dtype=jnp.float32):
    fan_in, fan_out = shape[-2], shape[-1]
    limit = (6.0 / (fan_in + fan_out)) ** 0.5
    return jax.random.uniform(key, shape, dtype, minval=-limit, maxval=limit)


def build_normalized_adjacency(key, n):
    """Deterministic random undirected graph -> D^{-1/2} A D^{-1/2} (dense)."""
    logits = jax.random.uniform(key, (n, n))
    a = (logits < 0.1).astype(jnp.float32)
    a = jnp.maximum(a, a.T)                        # symmetrize
    a = a * (1.0 - jnp.eye(n, dtype=jnp.float32))  # no self loops (DGL default)
    deg = jnp.sum(a, axis=1)
    d_inv_sqrt = jnp.where(deg > 0, 1.0 / jnp.sqrt(jnp.maximum(deg, 1e-12)), 0.0)
    return a * d_inv_sqrt[:, None] * d_inv_sqrt[None, :]


if __name__ == "__main__":
    # Residual (layer(g, h) + h) requires in_feats == n_hidden, so F is shared.
    N = 256          # number of graph nodes (2 row tiles of 128)
    F_DIM = 128      # in_feats == n_hidden
    N_LAYERS = 3     # GCN(n_layers=3) -> 3 GraphConv layers
    TM = 128         # row tile for the adjacency / output

    root = jax.random.PRNGKey(0)
    k_adj, k_feat, k_w, k_b = jax.random.split(root, 4)

    a_norm = build_normalized_adjacency(k_adj, N)
    features = jax.random.normal(k_feat, (N, F_DIM), dtype=jnp.float32)
    weights = xavier_uniform(k_w, (N_LAYERS, F_DIM, F_DIM))
    biases = 0.01 * jax.random.normal(k_b, (N_LAYERS, 1, F_DIM), dtype=jnp.float32)

    out = gcn_forward(a_norm, features, weights, biases, tm=TM)
    out = jax.block_until_ready(out)

    # Pure-JAX reference with the same precision model (bf16 MXU operands, f32 acc).
    a_bf = a_norm.astype(jnp.bfloat16)
    w_bf = weights.astype(jnp.bfloat16)
    h_ref = features
    for i in range(N_LAYERS):
        hw = jnp.dot(h_ref.astype(jnp.bfloat16), w_bf[i],
                     preferred_element_type=jnp.float32)
        agg = jnp.dot(a_bf, hw.astype(jnp.bfloat16),
                      preferred_element_type=jnp.float32)
        h_ref = jnp.maximum(agg + biases[i], 0.0) + h_ref
    assert jnp.allclose(out, h_ref, atol=1e-2, rtol=1e-2), "mismatch vs reference"

    print("KERNEL_OK")
</pallas_src>

<mosaic_0001>
module attributes {stable_mosaic.version = 11 : i64} {
  func.func @_gcn_stack_kernel(%arg0: i32, %arg1: i32, %arg2: memref<128x256xbf16, #tpu.memory_space<vmem>>, %arg3: memref<256x128xf32, #tpu.memory_space<vmem>>, %arg4: memref<1x128x128xbf16, #tpu.memory_space<vmem>>, %arg5: memref<1x1x128xf32, #tpu.memory_space<vmem>>, %arg6: memref<128x128xf32, #tpu.memory_space<vmem>>, %arg7: memref<256x128xf32, #tpu.memory_space<vmem>>, %arg8: memref<256x128xf32, #tpu.memory_space<vmem>>) attributes {dimension_semantics = [#tpu.dimension_semantics<arbitrary>, #tpu.dimension_semantics<arbitrary>], iteration_bounds = array<i64: 3, 2>, scalar_prefetch = 0 : i64, scratch_operands = 2 : i64, tpu.core_type = #tpu.core_type<tc>, window_params = [{transform_indices = @transform_0, window_bounds = array<i64: 128, 256>}, {pipeline_mode = #tpu.pipeline_mode<synchronous>, transform_indices = @transform_1, window_bounds = array<i64: 256, 128>}, {transform_indices = @transform_2, window_bounds = array<i64: 1, 128, 128>}, {transform_indices = @transform_3, window_bounds = array<i64: 1, 1, 128>}, {transform_indices = @transform_4, window_bounds = array<i64: 128, 128>}]} {
    %c0_i32 = arith.constant 0 : i32
    %0 = arith.cmpi eq, %arg0, %c0_i32 : i32
    %c0_i32_0 = arith.constant 0 : i32
    %1 = arith.cmpi eq, %arg1, %c0_i32_0 : i32
    %2 = arith.andi %0, %1 : i1
    %3 = arith.extui %2 : i1 to i32
    %c0_i32_1 = arith.constant 0 : i32
    %4 = arith.cmpi ne, %3, %c0_i32_1 : i32
    scf.if %4 {
      %c0_15 = arith.constant 0 : index
      %c0_16 = arith.constant 0 : index
      %26 = vector.load %arg3[%c0_15, %c0_16] : memref<256x128xf32, #tpu.memory_space<vmem>>, vector<256x128xf32>
      %c0_17 = arith.constant 0 : index
      %c0_18 = arith.constant 0 : index
      %27 = vector.load %arg7[%c0_17, %c0_18] : memref<256x128xf32, #tpu.memory_space<vmem>>, vector<256x128xf32>
      tpu.vector_store %arg7[%c0_17, %c0_18], %26 {strides = array<i32>} : memref<256x128xf32, #tpu.memory_space<vmem>>, vector<256x128xf32>,
    } else {
    }
    %c0_i32_2 = arith.constant 0 : i32
    %5 = arith.cmpi eq, %arg1, %c0_i32_2 : i32
    %6 = arith.extui %5 : i1 to i32
    %c0_i32_3 = arith.constant 0 : i32
    %7 = arith.cmpi ne, %6, %c0_i32_3 : i32
    scf.if %7 {
      %c0_15 = arith.constant 0 : index
      %c0_16 = arith.constant 0 : index
      %26 = vector.load %arg7[%c0_15, %c0_16] : memref<256x128xf32, #tpu.memory_space<vmem>>, vector<256x128xf32>
      %27 = arith.truncf %26 : vector<256x128xf32> to vector<256x128xbf16>
      %c0_17 = arith.constant 0 : index
      %c0_18 = arith.constant 0 : index
      %c0_19 = arith.constant 0 : index
      %28 = vector.load %arg4[%c0_17, %c0_18, %c0_19] : memref<1x128x128xbf16, #tpu.memory_space<vmem>>, vector<1x128x128xbf16>
      %29 = vector.shape_cast %28 : vector<1x128x128xbf16> to vector<128x128xbf16>
      %cst_20 = arith.constant dense<0.000000e+00> : vector<256x128xf32>
      %30 = tpu.matmul %27, %29, %cst_20 {dimension_numbers = #tpu.dot_dimension_numbers<[1], [0], [0], [1], [0, 0, 1, 1], [], []>} : vector<256x128xbf16>, vector<128x128xbf16>, vector<256x128xf32> -> vector<256x128xf32>
      %c0_21 = arith.constant 0 : index
      %c0_22 = arith.constant 0 : index
      %31 = vector.load %arg8[%c0_21, %c0_22] : memref<256x128xf32, #tpu.memory_space<vmem>>, vector<256x128xf32>
      tpu.vector_store %arg8[%c0_21, %c0_22], %30 {strides = array<i32>} : memref<256x128xf32, #tpu.memory_space<vmem>>, vector<256x128xf32>,
    } else {
    }
    %c0 = arith.constant 0 : index
    %c0_4 = arith.constant 0 : index
    %8 = vector.load %arg2[%c0, %c0_4] : memref<128x256xbf16, #tpu.memory_space<vmem>>, vector<128x256xbf16>
    %c0_5 = arith.constant 0 : index
    %c0_6 = arith.constant 0 : index
    %9 = vector.load %arg8[%c0_5, %c0_6] : memref<256x128xf32, #tpu.memory_space<vmem>>, vector<256x128xf32>
    %10 = arith.truncf %9 : vector<256x128xf32> to vector<256x128xbf16>
    %cst = arith.constant dense<0.000000e+00> : vector<128x128xf32>
    %11 = tpu.matmul %8, %10, %cst {dimension_numbers = #tpu.dot_dimension_numbers<[1], [0], [0], [1], [0, 0, 1, 1], [], []>} : vector<128x256xbf16>, vector<256x128xbf16>, vector<128x128xf32> -> vector<128x128xf32>
    %c128_i32 = arith.constant 128 : i32
    %12 = arith.muli %arg1, %c128_i32 : i32
    %13 = tpu.assume_multiple %12, 128 : i32
    %14 = arith.index_cast %13 : i32 to index
    %c0_7 = arith.constant 0 : index
    %15 = vector.load %arg7[%14, %c0_7] : memref<256x128xf32, #tpu.memory_space<vmem>>, vector<128x128xf32>
    %c0_8 = arith.constant 0 : index
    %c0_9 = arith.constant 0 : index
    %c0_10 = arith.constant 0 : index
    %16 = vector.load %arg5[%c0_8, %c0_9, %c0_10] : memref<1x1x128xf32, #tpu.memory_space<vmem>>, vector<1x1x128xf32>
    %17 = vector.shape_cast %16 : vector<1x1x128xf32> to vector<1x128xf32>
    %18 = vector.broadcast %17 : vector<1x128xf32> to vector<128x128xf32>
    %19 = arith.addf %11, %18 : vector<128x128xf32>
    %cst_11 = arith.constant 0.000000e+00 : f32
    %20 = vector.broadcast %cst_11 : f32 to vector<128x128xf32>
    %21 = arith.maximumf %19, %20 : vector<128x128xf32>
    %22 = arith.addf %21, %15 : vector<128x128xf32>
    %23 = arith.index_cast %13 : i32 to index
    %c0_12 = arith.constant 0 : index
    %24 = vector.load %arg7[%23, %c0_12] : memref<256x128xf32, #tpu.memory_space<vmem>>, vector<128x128xf32>
    tpu.vector_store %arg7[%23, %c0_12], %22 {strides = array<i32>} : memref<256x128xf32, #tpu.memory_space<vmem>>, vector<128x128xf32>,
    %c0_13 = arith.constant 0 : index
    %c0_14 = arith.constant 0 : index
    %25 = vector.load %arg6[%c0_13, %c0_14] : memref<128x128xf32, #tpu.memory_space<vmem>>, vector<128x128xf32>
    tpu.vector_store %arg6[%c0_13, %c0_14], %22 {strides = array<i32>} : memref<128x128xf32, #tpu.memory_space<vmem>>, vector<128x128xf32>,
    return
  }
  func.func @transform_0(%arg0: i32, %arg1: i32) -> (i32, i32) {
    %c0_i32 = arith.constant 0 : i32
    %c0_i32_0 = arith.constant 0 : i32
    return %arg1, %c0_i32 : i32, i32
  }
  func.func @transform_1(%arg0: i32, %arg1: i32) -> (i32, i32) {
    %c0_i32 = arith.constant 0 : i32
    %c0_i32_0 = arith.constant 0 : i32
    %c0_i32_1 = arith.constant 0 : i32
    return %c0_i32, %c0_i32_0 : i32, i32
  }
  func.func @transform_2(%arg0: i32, %arg1: i32) -> (i32, i32, i32) {
    %c0_i32 = arith.constant 0 : i32
    %c0_i32_0 = arith.constant 0 : i32
    %c0_i32_1 = arith.constant 0 : i32
    return %arg0, %c0_i32, %c0_i32_0 : i32, i32, i32
  }
  func.func @transform_3(%arg0: i32, %arg1: i32) -> (i32, i32, i32) {
    %c0_i32 = arith.constant 0 : i32
    %c0_i32_0 = arith.constant 0 : i32
    %c0_i32_1 = arith.constant 0 : i32
    return %arg0, %c0_i32, %c0_i32_0 : i32, i32, i32
  }
  func.func @transform_4(%arg0: i32, %arg1: i32) -> (i32, i32) {
    %c0_i32 = arith.constant 0 : i32
    %c0_i32_0 = arith.constant 0 : i32
    return %arg1, %c0_i32 : i32, i32
  }
}

</mosaic_0001>

<llo_original>
// kernel: tpu_custom_call.1
$region0: #{tpu_custom_call.1}
  #allocation0 [shape = 'u32[]', space=smem, size = 0x4, offset = 0x4, fixed_abs, tag = 'smem constant byte address 0x4 - core index']
  #allocation1 [shape = 'u32[72,128]{1,0:T(1,128)}', space=vmem, size = 0x9000, scoped, tag = 'internal scratch']
  #allocation2 [shape = 'f32[256,128]{1,0:T(8,128)}', space=vmem, size = 0x20000, scoped, tag = 'scratch operand']
  #allocation3 [shape = 'f32[256,128]{1,0:T(8,128)}', space=vmem, size = 0x20000, scoped, tag = 'scratch operand']
  %s0 = inlined_call_operand.hbm [shape: bf16[256,256], index: 0, kind: input, shape index: {}]
  %s1 = inlined_call_operand.hbm [shape: f32[256,128], index: 1, kind: input, shape index: {}]
  %s2 = inlined_call_operand.hbm [shape: bf16[3,128,128], index: 2, kind: input, shape index: {}]
  %s3 = inlined_call_operand.hbm [shape: f32[3,1,128], index: 3, kind: input, shape index: {}]
  %s4 = inlined_call_operand.hbm [shape: f32[256,128], index: 4, kind: output, shape index: {}]
  %s5 = sld [smem:[#allocation0]]
  $region73: #{tpu_custom_call.1} parent=0
    _
  %s7 = ssub.s32 1, %s5
  %s8 = scalar_select 0, %s7, %s5
  $region1: #{tpu_custom_call.1} parent=0
    #allocation4 [shape = 'u8[131072]{0}', space=vmem, size = 0x20000, scoped, tag = 'input window, operand 0']
    #allocation5 [shape = 's32[2]{0}', space=sflag, size = 0x8, scoped, tag = 'scoped memory for tpu_custom_call.1']
    #allocation6 [shape = 's32[2]{0}', space=sflag, size = 0x8, scoped, tag = 'scoped memory for tpu_custom_call.1']
    #allocation7 [shape = 'u8[131072]{0}', space=vmem, size = 0x20000, scoped, tag = 'input window, operand 1, single buffered']
    #allocation8 [shape = 's32[1]{0}', space=sflag, size = 0x4, scoped, tag = 'scoped memory for tpu_custom_call.1']
    #allocation9 [shape = 'u8[65536]{0}', space=vmem, size = 0x10000, scoped, tag = 'input window, operand 2']
    #allocation10 [shape = 'u8[1024]{0}', space=vmem, size = 0x400, scoped, tag = 'input window, operand 3']
    #allocation11 [shape = 'u8[131072]{0}', space=vmem, size = 0x20000, scoped, tag = 'output window, operand 0']
    %9 = vsyncpa [#allocation5], 0
    %s10 = scalar_lea.sflag [#allocation5], 1
    %11 = vsyncpa %s10, 0
    %12 = vsyncpa [#allocation8], 0
    %13 = vsyncpa [#allocation6], 0
    %s14 = scalar_lea.sflag [#allocation6], 1
    %15 = vsyncpa %s14, 0
    loop: start=0, step=1, limit=8
    $region2: #{tpu_custom_call.1} parent=1 // loop_pre_header
      _
    $region3: #{tpu_custom_call.1} parent=1 // loop_header
      %s17 = sphi 0, %s21
      %p18 = scmp.ge.s32.totalorder %s17, 8
      %s24 = sphi 0, %s36
      %s25 = sphi 0, %s32
      %s26 = sphi 0, %s24
      %s27 = sphi 0, %s25
      %s28 = sphi 0, %s26
      %s29 = sphi 0, %s27
      %s39 = sphi 0, %s41
      %s42 = sphi 0, %s39
      %s43 = sphi 0, %s42
      %s59 = sphi 0, %s43
      %s63 = sphi 0, %s63
      %s65 = sphi 0, %s63
      %s66 = sphi 0, %s65
      %s80 = sphi 0, %s66
      %s86 = sphi 0, %s88
      %s89 = sphi 0, %s86
      %s90 = sphi 0, %s89
      %s106 = sphi 0, %s90
      %s112 = sphi 0, %s114
      %s115 = sphi 0, %s112
      %s116 = sphi 0, %s115
      %s132 = sphi 0, %s116
      %s138 = sphi 0, %s140
      %s141 = sphi 0, %s138
      %s142 = sphi 0, %s141
      %s158 = sphi 0, %s142
    $region4: #{tpu_custom_call.1} parent=1 // loop_header_branch
      %20 = sbr.rel (%p18) target = $region8
    $region5: #{tpu_custom_call.1} parent=1 // loop_body
      %s22 = ssub.s32 %s17, 1
      %s23 = ssub.s32 %s17, 2
      %s30 = sadd.s32 1, %s25
      %p31 = scmp.ge.s32.totalorder %s30, 2
      %s32 = scalar_select %p31, 0, %s30
      %s33 = sadd.s32 1, %s24
      %s34 = scalar_select %p31, %s33, %s24
      %p35 = scmp.ge.s32.totalorder %s34, 3
      %s36 = scalar_select %p35, 0, %s34
      %s37 = ssub.s32 %s25, %s32
      %p38 = scmp.eq.s32.totalorder %s37, 0
      %s40 = sadd.s32 %s39, 1
      %s41 = scalar_select %p38, %s39, %s40
      %p44 = pneg %p38
      %p45 = scmp.eq.s32.totalorder %s17, 5
      %p46 = por %p44, %p45
      %p47 = scmp.ne.s32.totalorder %s39, %s42
      %p48 = scmp.eq.s32.totalorder %s17, 0
      %p49 = por %p47, %p48
      %p50 = scmp.ne.s32.totalorder %s39, %s42
      %p51 = scmp.eq.s32.totalorder %s22, 5
      %p52 = por %p50, %p51
      %p53 = scmp.ne.s32.totalorder %s42, %s43
      %p54 = scmp.eq.s32.totalorder %s22, 0
      %p55 = por %p53, %p54
      %p56 = scmp.ne.s32.totalorder %s42, %s43
      %p57 = scmp.eq.s32.totalorder %s23, 5
      %p58 = por %p56, %p57
      %p60 = scmp.ne.s32.totalorder %s43, %s59
      %p61 = scmp.eq.s32.totalorder %s23, 0
      %p62 = por %p60, %p61
      %s64 = sadd.s32 %s63, 1
      %p67 = scmp.eq.s32.totalorder %s17, 5
      %p68 = scmp.ne.s32.totalorder %s63, %s65
      %p69 = scmp.eq.s32.totalorder %s17, 0
      %p70 = por %p68, %p69
      %p71 = scmp.ne.s32.totalorder %s63, %s65
      %p72 = scmp.eq.s32.totalorder %s22, 5
      %p73 = por %p71, %p72
      %p74 = scmp.ne.s32.totalorder %s65, %s66
      %p75 = scmp.eq.s32.totalorder %s22, 0
      %p76 = por %p74, %p75
      %p77 = scmp.ne.s32.totalorder %s65, %s66
      %p78 = scmp.eq.s32.totalorder %s23, 5
      %p79 = por %p77, %p78
      %p81 = scmp.ne.s32.totalorder %s66, %s80
      %p82 = scmp.eq.s32.totalorder %s23, 0
      %p83 = por %p81, %p82
      %s84 = ssub.s32 %s24, %s36
      %p85 = scmp.eq.s32.totalorder %s84, 0
      %s87 = sadd.s32 %s86, 1
      %s88 = scalar_select %p85, %s86, %s87
      %p91 = pneg %p85
      %p92 = scmp.eq.s32.totalorder %s17, 5
      %p93 = por %p91, %p92
      %p94 = scmp.ne.s32.totalorder %s86, %s89
      %p95 = scmp.eq.s32.totalorder %s17, 0
      %p96 = por %p94, %p95
      %p97 = scmp.ne.s32.totalorder %s86, %s89
      %p98 = scmp.eq.s32.totalorder %s22, 5
      %p99 = por %p97, %p98
      %p100 = scmp.ne.s32.totalorder %s89, %s90
      %p101 = scmp.eq.s32.totalorder %s22, 0
      %p102 = por %p100, %p101
      %p103 = scmp.ne.s32.totalorder %s89, %s90
      %p104 = scmp.eq.s32.totalorder %s23, 5
      %p105 = por %p103, %p104
      %p107 = scmp.ne.s32.totalorder %s90, %s106
      %p108 = scmp.eq.s32.totalorder %s23, 0
      %p109 = por %p107, %p108
      %s110 = ssub.s32 %s24, %s36
      %p111 = scmp.eq.s32.totalorder %s110, 0
      %s113 = sadd.s32 %s112, 1
      %s114 = scalar_select %p111, %s112, %s113
      %p117 = pneg %p111
      %p118 = scmp.eq.s32.totalorder %s17, 5
      %p119 = por %p117, %p118
      %p120 = scmp.ne.s32.totalorder %s112, %s115
      %p121 = scmp.eq.s32.totalorder %s17, 0
      %p122 = por %p120, %p121
      %p123 = scmp.ne.s32.totalorder %s112, %s115
      %p124 = scmp.eq.s32.totalorder %s22, 5
      %p125 = por %p123, %p124
      %p126 = scmp.ne.s32.totalorder %s115, %s116
      %p127 = scmp.eq.s32.totalorder %s22, 0
      %p128 = por %p126, %p127
      %p129 = scmp.ne.s32.totalorder %s115, %s116
      %p130 = scmp.eq.s32.totalorder %s23, 5
      %p131 = por %p129, %p130
      %p133 = scmp.ne.s32.totalorder %s116, %s132
      %p134 = scmp.eq.s32.totalorder %s23, 0
      %p135 = por %p133, %p134
      %s136 = ssub.s32 %s25, %s32
      %p137 = scmp.eq.s32.totalorder %s136, 0
      %s139 = sadd.s32 %s138, 1
      %s140 = scalar_select %p137, %s138, %s139
      %p143 = pneg %p137
      %p144 = scmp.eq.s32.totalorder %s17, 5
      %p145 = por %p143, %p144
      %p146 = scmp.ne.s32.totalorder %s138, %s141
      %p147 = scmp.eq.s32.totalorder %s17, 0
      %p148 = por %p146, %p147
      %p149 = scmp.ne.s32.totalorder %s138, %s141
      %p150 = scmp.eq.s32.totalorder %s22, 5
      %p151 = por %p149, %p150
      %p152 = scmp.ne.s32.totalorder %s141, %s142
      %p153 = scmp.eq.s32.totalorder %s22, 0
      %p154 = por %p152, %p153
      %p155 = scmp.ne.s32.totalorder %s141, %s142
      %p156 = scmp.eq.s32.totalorder %s23, 5
      %p157 = por %p155, %p156
      %p159 = scmp.ne.s32.totalorder %s142, %s158
      %p160 = scmp.eq.s32.totalorder %s23, 0
      %p161 = por %p159, %p160
      %p162 = scmp.le.s32.totalorder 1, %s17
      %p163 = scmp.lt.s32.totalorder %s17, 7
      %p164 = pnand %p162, %p163
      %p165 = pneg %p164
      // Predicated region
      $region9: #{tpu_custom_call.1} parent=5 // pred_check
        _
      $region10: #{tpu_custom_call.1} parent=5 // pred_check_branch
        %167 = sbr.rel (%p164) target = $region12
      $region11: #{tpu_custom_call.1} parent=5 // pred_region
        %s168 = ssub.s32 %s17, 1
        // Predicated region
        $region13: #{tpu_custom_call.1} parent=11 // pred_check
          %p169 = pneg %p76
        $region14: #{tpu_custom_call.1} parent=11 // pred_check_branch
          %171 = sbr.rel (%p169) target = $region16
        $region15: #{tpu_custom_call.1} parent=11 // pred_region
          %173 = vsyncadd [#allocation8], 0
          %s174 = sshll.u32 %s1, 4
          %s175 = int_to_ptr.hbm [resolvable:$true] %s174
          %s176 = sshll.u32 [#allocation7], 4
          %s177 = int_to_ptr.vmem [resolvable:$true] %s176
          %182 = dma.hbm_to_vmem [thread:$0]  %s175, 4096, %s177, [#allocation8], 128, 128, 8
        $region16: #{tpu_custom_call.1} parent=11 // pred_fallthru
          _
      $region12: #{tpu_custom_call.1} parent=5 // pred_fallthru
        _
      %p183 = scmp.lt.s32.totalorder %s17, 6
      // Predicated region
      $region17: #{tpu_custom_call.1} parent=5 // pred_check
        %p184 = pneg %p183
      $region18: #{tpu_custom_call.1} parent=5 // pred_check_branch
        %186 = sbr.rel (%p184) target = $region20
      $region19: #{tpu_custom_call.1} parent=5 // pred_region
        // Predicated region
        $region21: #{tpu_custom_call.1} parent=19 // pred_check
          %p187 = pneg %p49
        $region22: #{tpu_custom_call.1} parent=19 // pred_check_branch
          %189 = sbr.rel (%p187) target = $region24
        $region23: #{tpu_custom_call.1} parent=19 // pred_region
          %s190 = sand.u32 %s17, 1
          %s191 = scalar_lea.sflag [#allocation5], %s190
          %s192 = sand.u32 %s39, 1
          %s193 = smul.addr %s192, 128
          %s194 = scalar_lea.vmem [#allocation4], %s193
          %s195 = smul.u32 16, %s25
          %197 = vsyncadd %s191, 0
          %s198 = smul.addr %s195, 2
          %s199 = smul.addr %s198, 4
          %s200 = scalar_lea.hbm %s0, %s199
          %s201 = sshll.u32 %s200, 4
          %s202 = int_to_ptr.hbm [resolvable:$true] %s201
          %s203 = sshll.u32 %s194, 4
          %s204 = int_to_ptr.vmem [resolvable:$true] %s203
          %209 = dma.hbm_to_vmem [thread:$0]  %s202, 2048, %s204, %s191, 128, 128, 8
        $region24: #{tpu_custom_call.1} parent=19 // pred_fallthru
          _
        // Predicated region
        $region25: #{tpu_custom_call.1} parent=19 // pred_check
          %p210 = pneg %p96
        $region26: #{tpu_custom_call.1} parent=19 // pred_check_branch
          %212 = sbr.rel (%p210) target = $region28
        $region27: #{tpu_custom_call.1} parent=19 // pred_region
          %s213 = sand.u32 %s17, 1
          %s214 = scalar_lea.sflag [#allocation5], %s213
          %s215 = sand.u32 %s86, 1
          %s216 = smul.addr %s215, 64
          %s217 = scalar_lea.vmem [#allocation9], %s216
          %219 = vsyncadd %s214, 0
          %s220 = smul.addr %s24, 16
          %s221 = smul.addr %s220, 4
          %s222 = scalar_lea.hbm %s2, %s221
          %s223 = sshll.u32 %s222, 4
          %s224 = int_to_ptr.hbm [resolvable:$true] %s223
          %s225 = sshll.u32 %s217, 4
          %s226 = int_to_ptr.vmem [resolvable:$true] %s225
          %231 = dma.hbm_to_vmem [thread:$0]  %s224, 1024, %s226, %s214, 64, 64, 4
        $region28: #{tpu_custom_call.1} parent=19 // pred_fallthru
          _
        // Predicated region
        $region29: #{tpu_custom_call.1} parent=19 // pred_check
          %p232 = pneg %p122
        $region30: #{tpu_custom_call.1} parent=19 // pred_check_branch
          %234 = sbr.rel (%p232) target = $region32
        $region31: #{tpu_custom_call.1} parent=19 // pred_region
          %s235 = sand.u32 %s17, 1
          %s236 = scalar_lea.sflag [#allocation5], %s235
          %s237 = sand.u32 %s112, 1
          %s238 = scalar_lea.vmem [#allocation10], %s237
          %240 = vsyncadd %s236, 0
          %s241 = scalar_lea.hbm %s3, %s24
          %s243 = sshll.u32 %s241, 4
          %s244 = int_to_ptr.hbm [resolvable:$true] %s243
          %s245 = sshll.u32 %s238, 4
          %s246 = int_to_ptr.vmem [resolvable:$true] %s245
          %248 = dma.hbm_to_vmem [thread:$0]  %s244, 16, %s246, %s236
        $region32: #{tpu_custom_call.1} parent=19 // pred_fallthru
          _
      $region20: #{tpu_custom_call.1} parent=5 // pred_fallthru
        _
      %p249 = scmp.le.s32.totalorder 1, %s17
      %p250 = scmp.lt.s32.totalorder %s17, 7
      %p251 = pnand %p249, %p250
      %p252 = pneg %p251
      // Predicated region
      $region33: #{tpu_custom_call.1} parent=5 // pred_check
        _
      $region34: #{tpu_custom_call.1} parent=5 // pred_check_branch
        %254 = sbr.rel (%p251) target = $region36
      $region35: #{tpu_custom_call.1} parent=5 // pred_region
        %s255 = ssub.s32 %s17, 1
        %s256 = sand.u32 %s22, 1
        %s257 = scalar_lea.sflag [#allocation5], %s256
        %s258 = sand.u32 %s42, 1
        %s259 = smul.addr %s258, 128
        %s260 = scalar_lea.vmem [#allocation4], %s259
        // Predicated region
        $region37: #{tpu_custom_call.1} parent=35 // pred_check
          %p261 = pneg %p55
        $region38: #{tpu_custom_call.1} parent=35 // pred_check_branch
          %263 = sbr.rel (%p261) target = $region40
        $region39: #{tpu_custom_call.1} parent=35 // pred_region
          %265 = dma.done %s257, 2048
        $region40: #{tpu_custom_call.1} parent=35 // pred_fallthru
          _
        // Predicated region
        $region41: #{tpu_custom_call.1} parent=35 // pred_check
          %p266 = pneg %p76
        $region42: #{tpu_custom_call.1} parent=35 // pred_check_branch
          %268 = sbr.rel (%p266) target = $region44
        $region43: #{tpu_custom_call.1} parent=35 // pred_region
          %270 = dma.done [#allocation8], 4096
        $region44: #{tpu_custom_call.1} parent=35 // pred_fallthru
          _
        %s271 = sand.u32 %s22, 1
        %s272 = scalar_lea.sflag [#allocation5], %s271
        %s273 = sand.u32 %s89, 1
        %s274 = smul.addr %s273, 64
        %s275 = scalar_lea.vmem [#allocation9], %s274
        // Predicated region
        $region45: #{tpu_custom_call.1} parent=35 // pred_check
          %p276 = pneg %p102
        $region46: #{tpu_custom_call.1} parent=35 // pred_check_branch
          %278 = sbr.rel (%p276) target = $region48
        $region47: #{tpu_custom_call.1} parent=35 // pred_region
          %280 = dma.done %s272, 1024
        $region48: #{tpu_custom_call.1} parent=35 // pred_fallthru
          _
        %s281 = sand.u32 %s22, 1
        %s282 = scalar_lea.sflag [#allocation5], %s281
        %s283 = sand.u32 %s115, 1
        %s284 = scalar_lea.vmem [#allocation10], %s283
        // Predicated region
        $region49: #{tpu_custom_call.1} parent=35 // pred_check
          %p285 = pneg %p128
        $region50: #{tpu_custom_call.1} parent=35 // pred_check_branch
          %287 = sbr.rel (%p285) target = $region52
        $region51: #{tpu_custom_call.1} parent=35 // pred_region
          %289 = dma.done %s282, 16
        $region52: #{tpu_custom_call.1} parent=35 // pred_fallthru
          _
        %s290 = sand.u32 %s22, 1
        %s291 = scalar_lea.sflag [#allocation5], %s290
        %s292 = sand.u32 %s42, 1
        %s293 = smul.addr %s292, 128
        %s294 = scalar_lea.vmem [#allocation4], %s293
        %p295 = pneg %p55
        %p296 = pneg %p52
        %p297 = pneg %p76
        %p298 = pneg %p73
        %s299 = sand.u32 %s22, 1
        %s300 = scalar_lea.sflag [#allocation5], %s299
        %s301 = sand.u32 %s89, 1
        %s302 = smul.addr %s301, 64
        %s303 = scalar_lea.vmem [#allocation9], %s302
        %p304 = pneg %p102
        %p305 = pneg %p99
        %s306 = sand.u32 %s22, 1
        %s307 = scalar_lea.sflag [#allocation5], %s306
        %s308 = sand.u32 %s115, 1
        %s309 = scalar_lea.vmem [#allocation10], %s308
        %p310 = pneg %p128
        %p311 = pneg %p125
        %p312 = pneg %p154
        %p313 = pneg %p151
        %s314 = sand.u32 %s141, 1
        %s315 = scalar_lea.sflag [#allocation6], %s314
        %s316 = sand.u32 %s141, 1
        %s317 = smul.addr %s316, 128
        %s318 = scalar_lea.vmem [#allocation11], %s317
        %s319 = smul.u32 16, %s27
        %s320 = smul.u32 16, %s27
        %p321 = scmp.eq.s32.totalorder %s26, 0
        %p322 = scmp.eq.s32.totalorder %s27, 0
        %p323 = pnand %p321, %p322
        %p324 = pneg %p323
        // Predicated region
        $region53: #{tpu_custom_call.1} parent=35 // pred_check
          _
        $region54: #{tpu_custom_call.1} parent=35 // pred_check_branch
          %326 = sbr.rel (%p323) target = $region56
        $region55: #{tpu_custom_call.1} parent=35 // pred_region
          %v327 = vld [vmem:[#allocation7] sm:$0xff]
          %v328 = vld [vmem:[#allocation7 + $0x8] sm:$0xff]
          %v329 = vld [vmem:[#allocation7 + $0x10] sm:$0xff]
          %v330 = vld [vmem:[#allocation7 + $0x18] sm:$0xff]
          %v331 = vld [vmem:[#allocation7 + $0x20] sm:$0xff]
          %v332 = vld [vmem:[#allocation7 + $0x28] sm:$0xff]
          %v333 = vld [vmem:[#allocation7 + $0x30] sm:$0xff]
          %v334 = vld [vmem:[#allocation7 + $0x38] sm:$0xff]
          %v335 = vld [vmem:[#allocation7 + $0x40] sm:$0xff]
          %v336 = vld [vmem:[#allocation7 + $0x48] sm:$0xff]
          %v337 = vld [vmem:[#allocation7 + $0x50] sm:$0xff]
          %v338 = vld [vmem:[#allocation7 + $0x58] sm:$0xff]
          %v339 = vld [vmem:[#allocation7 + $0x60] sm:$0xff]
          %v340 = vld [vmem:[#allocation7 + $0x68] sm:$0xff]
          %v341 = vld [vmem:[#allocation7 + $0x70] sm:$0xff]
          %v342 = vld [vmem:[#allocation7 + $0x78] sm:$0xff]
          %v343 = vld [vmem:[#allocation7 + $0x80] sm:$0xff]
          %v344 = vld [vmem:[#allocation7 + $0x88] sm:$0xff]
          %v345 = vld [vmem:[#allocation7 + $0x90] sm:$0xff]
          %v346 = vld [vmem:[#allocation7 + $0x98] sm:$0xff]
          %v347 = vld [vmem:[#allocation7 + $0xa0] sm:$0xff]
          %v348 = vld [vmem:[#allocation7 + $0xa8] sm:$0xff]
          %v349 = vld [vmem:[#allocation7 + $0xb0] sm:$0xff]
          %v350 = vld [vmem:[#allocation7 + $0xb8] sm:$0xff]
          %v351 = vld [vmem:[#allocation7 + $0xc0] sm:$0xff]
          %v352 = vld [vmem:[#allocation7 + $0xc8] sm:$0xff]
          %v353 = vld [vmem:[#allocation7 + $0xd0] sm:$0xff]
          %v354 = vld [vmem:[#allocation7 + $0xd8] sm:$0xff]
          %v355 = vld [vmem:[#allocation7 + $0xe0] sm:$0xff]
          %v356 = vld [vmem:[#allocation7 + $0xe8] sm:$0xff]
          %v357 = vld [vmem:[#allocation7 + $0xf0] sm:$0xff]
          %v358 = vld [vmem:[#allocation7 + $0xf8] sm:$0xff]
          %359 = vst [vmem:[#allocation2] sm:$0xff] %v327
          %360 = vst [vmem:[#allocation2 + $0x8] sm:$0xff] %v328
          %361 = vst [vmem:[#allocation2 + $0x10] sm:$0xff] %v329
          %362 = vst [vmem:[#allocation2 + $0x18] sm:$0xff] %v330
          %363 = vst [vmem:[#allocation2 + $0x20] sm:$0xff] %v331
          %364 = vst [vmem:[#allocation2 + $0x28] sm:$0xff] %v332
          %365 = vst [vmem:[#allocation2 + $0x30] sm:$0xff] %v333
          %366 = vst [vmem:[#allocation2 + $0x38] sm:$0xff] %v334
          %367 = vst [vmem:[#allocation2 + $0x40] sm:$0xff] %v335
          %368 = vst [vmem:[#allocation2 + $0x48] sm:$0xff] %v336
          %369 = vst [vmem:[#allocation2 + $0x50] sm:$0xff] %v337
          %370 = vst [vmem:[#allocation2 + $0x58] sm:$0xff] %v338
          %371 = vst [vmem:[#allocation2 + $0x60] sm:$0xff] %v339
          %372 = vst [vmem:[#allocation2 + $0x68] sm:$0xff] %v340
          %373 = vst [vmem:[#allocation2 + $0x70] sm:$0xff] %v341
          %374 = vst [vmem:[#allocation2 + $0x78] sm:$0xff] %v342
          %375 = vst [vmem:[#allocation2 + $0x80] sm:$0xff] %v343
          %376 = vst [vmem:[#allocation2 + $0x88] sm:$0xff] %v344
          %377 = vst [vmem:[#allocation2 + $0x90] sm:$0xff] %v345
          %378 = vst [vmem:[#allocation2 + $0x98] sm:$0xff] %v346
          %379 = vst [vmem:[#allocation2 + $0xa0] sm:$0xff] %v347
          %380 = vst [vmem:[#allocation2 + $0xa8] sm:$0xff] %v348
          %381 = vst [vmem:[#allocation2 + $0xb0] sm:$0xff] %v349
          %382 = vst [vmem:[#allocation2 + $0xb8] sm:$0xff] %v350
          %383 = vst [vmem:[#allocation2 + $0xc0] sm:$0xff] %v351
          %384 = vst [vmem:[#allocation2 + $0xc8] sm:$0xff] %v352
          %385 = vst [vmem:[#allocation2 + $0xd0] sm:$0xff] %v353
          %386 = vst [vmem:[#allocation2 + $0xd8] sm:$0xff] %v354
          %387 = vst [vmem:[#allocation2 + $0xe0] sm:$0xff] %v355
          %388 = vst [vmem:[#allocation2 + $0xe8] sm:$0xff] %v356
          %389 = vst [vmem:[#allocation2 + $0xf0] sm:$0xff] %v357
          %390 = vst [vmem:[#allocation2 + $0xf8] sm:$0xff] %v358
        $region56: #{tpu_custom_call.1} parent=35 // pred_fallthru
          _
        // Predicated region
        $region57: #{tpu_custom_call.1} parent=35 // pred_check
          %p391 = pneg %p322
        $region58: #{tpu_custom_call.1} parent=35 // pred_check_branch
          %393 = sbr.rel (%p391) target = $region60
        $region59: #{tpu_custom_call.1} parent=35 // pred_region
          %v394 = vld [vmem:[#allocation2] sm:$0xff]
          %v395 = vld [vmem:[#allocation2 + $0x8] sm:$0xff]
          %v396 = vld [vmem:[#allocation2 + $0x10] sm:$0xff]
          %v397 = vld [vmem:[#allocation2 + $0x18] sm:$0xff]
          %v398 = vld [vmem:[#allocation2 + $0x20] sm:$0xff]
          %v399 = vld [vmem:[#allocation2 + $0x28] sm:$0xff]
          %v400 = vld [vmem:[#allocation2 + $0x30] sm:$0xff]
          %v401 = vld [vmem:[#allocation2 + $0x38] sm:$0xff]
          %v402 = vld [vmem:[#allocation2 + $0x40] sm:$0xff]
          %v403 = vld [vmem:[#allocation2 + $0x48] sm:$0xff]
          %v404 = vld [vmem:[#allocation2 + $0x50] sm:$0xff]
          %v405 = vld [vmem:[#allocation2 + $0x58] sm:$0xff]
          %v406 = vld [vmem:[#allocation2 + $0x60] sm:$0xff]
          %v407 = vld [vmem:[#allocation2 + $0x68] sm:$0xff]
          %v408 = vld [vmem:[#allocation2 + $0x70] sm:$0xff]
          %v409 = vld [vmem:[#allocation2 + $0x78] sm:$0xff]
          %v410 = vld [vmem:[#allocation2 + $0x80] sm:$0xff]
          %v411 = vld [vmem:[#allocation2 + $0x88] sm:$0xff]
          %v412 = vld [vmem:[#allocation2 + $0x90] sm:$0xff]
          %v413 = vld [vmem:[#allocation2 + $0x98] sm:$0xff]
          %v414 = vld [vmem:[#allocation2 + $0xa0] sm:$0xff]
          %v415 = vld [vmem:[#allocation2 + $0xa8] sm:$0xff]
          %v416 = vld [vmem:[#allocation2 + $0xb0] sm:$0xff]
          %v417 = vld [vmem:[#allocation2 + $0xb8] sm:$0xff]
          %v418 = vld [vmem:[#allocation2 + $0xc0] sm:$0xff]
          %v419 = vld [vmem:[#allocation2 + $0xc8] sm:$0xff]
          %v420 = vld [vmem:[#allocation2 + $0xd0] sm:$0xff]
          %v421 = vld [vmem:[#allocation2 + $0xd8] sm:$0xff]
          %v422 = vld [vmem:[#allocation2 + $0xe0] sm:$0xff]
          %v423 = vld [vmem:[#allocation2 + $0xe8] sm:$0xff]
          %v424 = vld [vmem:[#allocation2 + $0xf0] sm:$0xff]
          %v425 = vld [vmem:[#allocation2 + $0xf8] sm:$0xff]
          %v426 = vpack.c.bf16 %v395, %v394
          %v427 = vpack.c.bf16 %v397, %v396
          %v428 = vpack.c.bf16 %v399, %v398
          %v429 = vpack.c.bf16 %v401, %v400
          %v430 = vpack.c.bf16 %v403, %v402
          %v431 = vpack.c.bf16 %v405, %v404
          %v432 = vpack.c.bf16 %v407, %v406
          %v433 = vpack.c.bf16 %v409, %v408
          %v434 = vpack.c.bf16 %v411, %v410
          %v435 = vpack.c.bf16 %v413, %v412
          %v436 = vpack.c.bf16 %v415, %v414
          %v437 = vpack.c.bf16 %v417, %v416
          %v438 = vpack.c.bf16 %v419, %v418
          %v439 = vpack.c.bf16 %v421, %v420
          %v440 = vpack.c.bf16 %v423, %v422
          %v441 = vpack.c.bf16 %v425, %v424
          %v442 = vld [vmem:[%s275] sm:$0xf]
          %v443 = vld [vmem:[%s275 + $0x4] sm:$0xf]
          %v444 = vld [vmem:[%s275 + $0x8] sm:$0xf]
          %v445 = vld [vmem:[%s275 + $0xc] sm:$0xf]
          %v446 = vld [vmem:[%s275 + $0x10] sm:$0xf]
          %v447 = vld [vmem:[%s275 + $0x14] sm:$0xf]
          %v448 = vld [vmem:[%s275 + $0x18] sm:$0xf]
          %v449 = vld [vmem:[%s275 + $0x1c] sm:$0xf]
          %v450 = vld [vmem:[%s275 + $0x20] sm:$0xf]
          %v451 = vld [vmem:[%s275 + $0x24] sm:$0xf]
          %v452 = vld [vmem:[%s275 + $0x28] sm:$0xf]
          %v453 = vld [vmem:[%s275 + $0x2c] sm:$0xf]
          %v454 = vld [vmem:[%s275 + $0x30] sm:$0xf]
          %v455 = vld [vmem:[%s275 + $0x34] sm:$0xf]
          %v456 = vld [vmem:[%s275 + $0x38] sm:$0xf]
          %v457 = vld [vmem:[%s275 + $0x3c] sm:$0xf]
          %v474 = vunpack.c.l.b16 %v442
          %v475 = vunpack.c.l.b16 %v443
          %v476 = vunpack.c.l.b16 %v444
          %v477 = vunpack.c.l.b16 %v445
          %v478 = vunpack.c.l.b16 %v446
          %v479 = vunpack.c.l.b16 %v447
          %v480 = vunpack.c.l.b16 %v448
          %v481 = vunpack.c.l.b16 %v449
          %v482 = vunpack.c.l.b16 %v450
          %v483 = vunpack.c.l.b16 %v451
          %v484 = vunpack.c.l.b16 %v452
          %v485 = vunpack.c.l.b16 %v453
          %v486 = vunpack.c.l.b16 %v454
          %v487 = vunpack.c.l.b16 %v455
          %v488 = vunpack.c.l.b16 %v456
          %v489 = vunpack.c.l.b16 %v457
          %v490 = vpack.c.b16 %v475, %v474
          %v491 = vpack.c.b16 %v477, %v476
          %v492 = vpack.c.b16 %v479, %v478
          %v493 = vpack.c.b16 %v481, %v480
          %v494 = vpack.c.b16 %v483, %v482
          %v495 = vpack.c.b16 %v485, %v484
          %v496 = vpack.c.b16 %v487, %v486
          %v497 = vpack.c.b16 %v489, %v488
          %506 = vmatpush.bf16.msra.mxu0 %v497
          %507 = vmatpush.bf16.msra.mxu0 %v496
          %508 = vmatpush.bf16.msra.mxu0 %v495
          %509 = vmatpush.bf16.msra.mxu0 %v494
          %510 = vmatpush.bf16.msra.mxu0 %v493
          %511 = vmatpush.bf16.msra.mxu0 %v492
          %512 = vmatpush.bf16.msra.mxu0 %v491
          %513 = vmatpush.bf16.msra.mxu0 %v490
          %514 = vmatmul.bf16.gmra.mxu0 %v426
          %v515 = vpop.f32.mrf.mxu0
          %v516 = vadd.f32 0.0, %v515
          %v517 = vpop.f32.mrf.mxu0
          %v518 = vadd.f32 0.0, %v517
          %519 = vmatmul.bf16.gmra.mxu0 %v427
          %v520 = vpop.f32.mrf.mxu0
          %v521 = vadd.f32 0.0, %v520
          %v522 = vpop.f32.mrf.mxu0
          %v523 = vadd.f32 0.0, %v522
          %524 = vmatmul.bf16.gmra.mxu0 %v428
          %v525 = vpop.f32.mrf.mxu0
          %v526 = vadd.f32 0.0, %v525
          %v527 = vpop.f32.mrf.mxu0
          %v528 = vadd.f32 0.0, %v527
          %529 = vmatmul.bf16.gmra.mxu0 %v429
          %v530 = vpop.f32.mrf.mxu0
          %v531 = vadd.f32 0.0, %v530
          %v532 = vpop.f32.mrf.mxu0
          %v533 = vadd.f32 0.0, %v532
          %534 = vmatmul.bf16.gmra.mxu0 %v430
          %v535 = vpop.f32.mrf.mxu0
          %v536 = vadd.f32 0.0, %v535
          %v537 = vpop.f32.mrf.mxu0
          %v538 = vadd.f32 0.0, %v537
          %539 = vmatmul.bf16.gmra.mxu0 %v431
          %v540 = vpop.f32.mrf.mxu0
          %v541 = vadd.f32 0.0, %v540
          %v542 = vpop.f32.mrf.mxu0
          %v543 = vadd.f32 0.0, %v542
          %544 = vmatmul.bf16.gmra.mxu0 %v432
          %v545 = vpop.f32.mrf.mxu0
          %v546 = vadd.f32 0.0, %v545
          %v547 = vpop.f32.mrf.mxu0
          %v548 = vadd.f32 0.0, %v547
          %549 = vmatmul.bf16.gmra.mxu0 %v433
          %v550 = vpop.f32.mrf.mxu0
          %v551 = vadd.f32 0.0, %v550
          %v552 = vpop.f32.mrf.mxu0
          %v553 = vadd.f32 0.0, %v552
          %554 = vmatmul.bf16.gmra.mxu0 %v434
          %v555 = vpop.f32.mrf.mxu0
          %v556 = vadd.f32 0.0, %v555
          %v557 = vpop.f32.mrf.mxu0
          %v558 = vadd.f32 0.0, %v557
          %559 = vmatmul.bf16.gmra.mxu0 %v435
          %v560 = vpop.f32.mrf.mxu0
          %v561 = vadd.f32 0.0, %v560
          %v562 = vpop.f32.mrf.mxu0
          %v563 = vadd.f32 0.0, %v562
          %564 = vmatmul.bf16.gmra.mxu0 %v436
          %v565 = vpop.f32.mrf.mxu0
          %v566 = vadd.f32 0.0, %v565
          %v567 = vpop.f32.mrf.mxu0
          %v568 = vadd.f32 0.0, %v567
          %569 = vmatmul.bf16.gmra.mxu0 %v437
          %v570 = vpop.f32.mrf.mxu0
          %v571 = vadd.f32 0.0, %v570
          %v572 = vpop.f32.mrf.mxu0
          %v573 = vadd.f32 0.0, %v572
          %574 = vmatmul.bf16.gmra.mxu0 %v438
          %v575 = vpop.f32.mrf.mxu0
          %v576 = vadd.f32 0.0, %v575
          %v577 = vpop.f32.mrf.mxu0
          %v578 = vadd.f32 0.0, %v577
          %579 = vmatmul.bf16.gmra.mxu0 %v439
          %v580 = vpop.f32.mrf.mxu0
          %v581 = vadd.f32 0.0, %v580
          %v582 = vpop.f32.mrf.mxu0
          %v583 = vadd.f32 0.0, %v582
          %584 = vmatmul.bf16.gmra.mxu0 %v440
          %v585 = vpop.f32.mrf.mxu0
          %v586 = vadd.f32 0.0, %v585
          %v587 = vpop.f32.mrf.mxu0
          %v588 = vadd.f32 0.0, %v587
          %589 = vmatmul.bf16.gmra.mxu0 %v441
          %v590 = vpop.f32.mrf.mxu0
          %v591 = vadd.f32 0.0, %v590
          %v592 = vpop.f32.mrf.mxu0
          %v593 = vadd.f32 0.0, %v592
          %594 = vdwg.mxu0
          %595 = vst [vmem:[#allocation3] sm:$0xff] %v516
          %596 = vst [vmem:[#allocation3 + $0x8] sm:$0xff] %v518
          %597 = vst [vmem:[#allocation3 + $0x10] sm:$0xff] %v521
          %598 = vst [vmem:[#allocation3 + $0x18] sm:$0xff] %v523
          %599 = vst [vmem:[#allocation3 + $0x20] sm:$0xff] %v526
          %600 = vst [vmem:[#allocation3 + $0x28] sm:$0xff] %v528
          %601 = vst [vmem:[#allocation3 + $0x30] sm:$0xff] %v531
          %602 = vst [vmem:[#allocation3 + $0x38] sm:$0xff] %v533
          %603 = vst [vmem:[#allocation3 + $0x40] sm:$0xff] %v536
          %604 = vst [vmem:[#allocation3 + $0x48] sm:$0xff] %v538
          %605 = vst [vmem:[#allocation3 + $0x50] sm:$0xff] %v541
          %606 = vst [vmem:[#allocation3 + $0x58] sm:$0xff] %v543
          %607 = vst [vmem:[#allocation3 + $0x60] sm:$0xff] %v546
          %608 = vst [vmem:[#allocation3 + $0x68] sm:$0xff] %v548
          %609 = vst [vmem:[#allocation3 + $0x70] sm:$0xff] %v551
          %610 = vst [vmem:[#allocation3 + $0x78] sm:$0xff] %v553
          %611 = vst [vmem:[#allocation3 + $0x80] sm:$0xff] %v556
          %612 = vst [vmem:[#allocation3 + $0x88] sm:$0xff] %v558
          %613 = vst [vmem:[#allocation3 + $0x90] sm:$0xff] %v561
          %614 = vst [vmem:[#allocation3 + $0x98] sm:$0xff] %v563
          %615 = vst [vmem:[#allocation3 + $0xa0] sm:$0xff] %v566
          %616 = vst [vmem:[#allocation3 + $0xa8] sm:$0xff] %v568
          %617 = vst [vmem:[#allocation3 + $0xb0] sm:$0xff] %v571
          %618 = vst [vmem:[#allocation3 + $0xb8] sm:$0xff] %v573
          %619 = vst [vmem:[#allocation3 + $0xc0] sm:$0xff] %v576
          %620 = vst [vmem:[#allocation3 + $0xc8] sm:$0xff] %v578
          %621 = vst [vmem:[#allocation3 + $0xd0] sm:$0xff] %v581
          %622 = vst [vmem:[#allocation3 + $0xd8] sm:$0xff] %v583
          %623 = vst [vmem:[#allocation3 + $0xe0] sm:$0xff] %v586
          %624 = vst [vmem:[#allocation3 + $0xe8] sm:$0xff] %v588
          %625 = vst [vmem:[#allocation3 + $0xf0] sm:$0xff] %v591
          %626 = vst [vmem:[#allocation3 + $0xf8] sm:$0xff] %v593
        $region60: #{tpu_custom_call.1} parent=35 // pred_fallthru
          _
        %v627 = vld [vmem:[%s260] sm:$0xff]
        %v628 = vld [vmem:[%s260 + $0x8] sm:$0xff]
        %v629 = vld [vmem:[%s260 + $0x10] sm:$0xff]
        %v630 = vld [vmem:[%s260 + $0x18] sm:$0xff]
        %v631 = vld [vmem:[%s260 + $0x20] sm:$0xff]
        %v632 = vld [vmem:[%s260 + $0x28] sm:$0xff]
        %v633 = vld [vmem:[%s260 + $0x30] sm:$0xff]
        %v634 = vld [vmem:[%s260 + $0x38] sm:$0xff]
        %v635 = vld [vmem:[%s260 + $0x40] sm:$0xff]
        %v636 = vld [vmem:[%s260 + $0x48] sm:$0xff]
        %v637 = vld [vmem:[%s260 + $0x50] sm:$0xff]
        %v638 = vld [vmem:[%s260 + $0x58] sm:$0xff]
        %v639 = vld [vmem:[%s260 + $0x60] sm:$0xff]
        %v640 = vld [vmem:[%s260 + $0x68] sm:$0xff]
        %v641 = vld [vmem:[%s260 + $0x70] sm:$0xff]
        %v642 = vld [vmem:[%s260 + $0x78] sm:$0xff]
        %v643 = vld [vmem:[#allocation3] sm:$0xff]
        %v644 = vld [vmem:[#allocation3 + $0x8] sm:$0xff]
        %v645 = vld [vmem:[#allocation3 + $0x10] sm:$0xff]
        %v646 = vld [vmem:[#allocation3 + $0x18] sm:$0xff]
        %v647 = vld [vmem:[#allocation3 + $0x20] sm:$0xff]
        %v648 = vld [vmem:[#allocation3 + $0x28] sm:$0xff]
        %v649 = vld [vmem:[#allocation3 + $0x30] sm:$0xff]
        %v650 = vld [vmem:[#allocation3 + $0x38] sm:$0xff]
        %v651 = vld [vmem:[#allocation3 + $0x40] sm:$0xff]
        %v652 = vld [vmem:[#allocation3 + $0x48] sm:$0xff]
        %v653 = vld [vmem:[#allocation3 + $0x50] sm:$0xff]
        %v654 = vld [vmem:[#allocation3 + $0x58] sm:$0xff]
        %v655 = vld [vmem:[#allocation3 + $0x60] sm:$0xff]
        %v656 = vld [vmem:[#allocation3 + $0x68] sm:$0xff]
        %v657 = vld [vmem:[#allocation3 + $0x70] sm:$0xff]
        %v658 = vld [vmem:[#allocation3 + $0x78] sm:$0xff]
        %v659 = vld [vmem:[#allocation3 + $0x80] sm:$0xff]
        %v660 = vld [vmem:[#allocation3 + $0x88] sm:$0xff]
        %v661 = vld [vmem:[#allocation3 + $0x90] sm:$0xff]
        %v662 = vld [vmem:[#allocation3 + $0x98] sm:$0xff]
        %v663 = vld [vmem:[#allocation3 + $0xa0] sm:$0xff]
        %v664 = vld [vmem:[#allocation3 + $0xa8] sm:$0xff]
        %v665 = vld [vmem:[#allocation3 + $0xb0] sm:$0xff]
        %v666 = vld [vmem:[#allocation3 + $0xb8] sm:$0xff]
        %v667 = vld [vmem:[#allocation3 + $0xc0] sm:$0xff]
        %v668 = vld [vmem:[#allocation3 + $0xc8] sm:$0xff]
        %v669 = vld [vmem:[#allocation3 + $0xd0] sm:$0xff]
        %v670 = vld [vmem:[#allocation3 + $0xd8] sm:$0xff]
        %v671 = vld [vmem:[#allocation3 + $0xe0] sm:$0xff]
        %v672 = vld [vmem:[#allocation3 + $0xe8] sm:$0xff]
        %v673 = vld [vmem:[#allocation3 + $0xf0] sm:$0xff]
        %v674 = vld [vmem:[#allocation3 + $0xf8] sm:$0xff]
        %v675 = vpack.c.bf16 %v644, %v643
        %v676 = vpack.c.bf16 %v646, %v645
        %v677 = vpack.c.bf16 %v648, %v647
        %v678 = vpack.c.bf16 %v650, %v649
        %v679 = vpack.c.bf16 %v652, %v651
        %v680 = vpack.c.bf16 %v654, %v653
        %v681 = vpack.c.bf16 %v656, %v655
        %v682 = vpack.c.bf16 %v658, %v657
        %v683 = vpack.c.bf16 %v660, %v659
        %v684 = vpack.c.bf16 %v662, %v661
        %v685 = vpack.c.bf16 %v664, %v663
        %v686 = vpack.c.bf16 %v666, %v665
        %v687 = vpack.c.bf16 %v668, %v667
        %v688 = vpack.c.bf16 %v670, %v669
        %v689 = vpack.c.bf16 %v672, %v671
        %v690 = vpack.c.bf16 %v674, %v673
        %s691 = smul.u32 %s27, 128
        %s692 = scalar_lea.vmem [#allocation2], %s691
        %v693 = vld [vmem:[%s692] sm:$0xff]
        %v694 = vld [vmem:[%s692 + $0x8] sm:$0xff]
        %v695 = vld [vmem:[%s692 + $0x10] sm:$0xff]
        %v696 = vld [vmem:[%s692 + $0x18] sm:$0xff]
        %v697 = vld [vmem:[%s692 + $0x20] sm:$0xff]
        %v698 = vld [vmem:[%s692 + $0x28] sm:$0xff]
        %v699 = vld [vmem:[%s692 + $0x30] sm:$0xff]
        %v700 = vld [vmem:[%s692 + $0x38] sm:$0xff]
        %v701 = vld [vmem:[%s692 + $0x40] sm:$0xff]
        %v702 = vld [vmem:[%s692 + $0x48] sm:$0xff]
        %v703 = vld [vmem:[%s692 + $0x50] sm:$0xff]
        %v704 = vld [vmem:[%s692 + $0x58] sm:$0xff]
        %v705 = vld [vmem:[%s692 + $0x60] sm:$0xff]
        %v706 = vld [vmem:[%s692 + $0x68] sm:$0xff]
        %v707 = vld [vmem:[%s692 + $0x70] sm:$0xff]
        %v708 = vld [vmem:[%s692 + $0x78] sm:$0xff]
        %v709 = vld [vmem:[%s284] sm:$0x1]
        %v711 = vperm.slane %v709, 0
        %v729 = vunpack.c.l.b16 %v627
        %v730 = vunpack.c.h.b16 %v627
        %v731 = vunpack.c.l.b16 %v628
        %v732 = vunpack.c.h.b16 %v628
        %v733 = vunpack.c.l.b16 %v629
        %v734 = vunpack.c.h.b16 %v629
        %v735 = vunpack.c.l.b16 %v630
        %v736 = vunpack.c.h.b16 %v630
        %v737 = vunpack.c.l.b16 %v631
        %v738 = vunpack.c.h.b16 %v631
        %v739 = vunpack.c.l.b16 %v632
        %v740 = vunpack.c.h.b16 %v632
        %v741 = vunpack.c.l.b16 %v633
        %v742 = vunpack.c.h.b16 %v633
        %v743 = vunpack.c.l.b16 %v634
        %v744 = vunpack.c.h.b16 %v634
        %v745 = vunpack.c.l.b16 %v635
        %v746 = vunpack.c.h.b16 %v635
        %v747 = vunpack.c.l.b16 %v636
        %v748 = vunpack.c.h.b16 %v636
        %v749 = vunpack.c.l.b16 %v637
        %v750 = vunpack.c.h.b16 %v637
        %v751 = vunpack.c.l.b16 %v638
        %v752 = vunpack.c.h.b16 %v638
        %v753 = vunpack.c.l.b16 %v639
        %v754 = vunpack.c.h.b16 %v639
        %v755 = vunpack.c.l.b16 %v640
        %v756 = vunpack.c.h.b16 %v640
        %v757 = vunpack.c.l.b16 %v641
        %v758 = vunpack.c.h.b16 %v641
        %v759 = vunpack.c.l.b16 %v642
        %v760 = vunpack.c.h.b16 %v642
        %v761 = vpack.c.b16 %v731, %v729
        %v762 = vpack.c.b16 %v732, %v730
        %v763 = vpack.c.b16 %v735, %v733
        %v764 = vpack.c.b16 %v736, %v734
        %v765 = vpack.c.b16 %v739, %v737
        %v766 = vpack.c.b16 %v740, %v738
        %v767 = vpack.c.b16 %v743, %v741
        %v768 = vpack.c.b16 %v744, %v742
        %v769 = vpack.c.b16 %v747, %v745
        %v770 = vpack.c.b16 %v748, %v746
        %v771 = vpack.c.b16 %v751, %v749
        %v772 = vpack.c.b16 %v752, %v750
        %v773 = vpack.c.b16 %v755, %v753
        %v774 = vpack.c.b16 %v756, %v754
        %v775 = vpack.c.b16 %v759, %v757
        %v776 = vpack.c.b16 %v760, %v758
        %793 = vmatpush.bf16.msra.mxu0 %v682
        %794 = vmatpush.bf16.msra.mxu0 %v681
        %795 = vmatpush.bf16.msra.mxu0 %v680
        %796 = vmatpush.bf16.msra.mxu0 %v679
        %797 = vmatpush.bf16.msra.mxu0 %v678
        %798 = vmatpush.bf16.msra.mxu0 %v677
        %799 = vmatpush.bf16.msra.mxu0 %v676
        %800 = vmatpush.bf16.msra.mxu0 %v675
        %801 = vmatmul.bf16.gmra.mxu0 %v761
        %v802 = vpop.f32.mrf.mxu0
        %v803 = vadd.f32 %v711, %v802
        %v804 = vpop.f32.mrf.mxu0
        %v805 = vadd.f32 %v711, %v804
        %806 = vmatmul.bf16.gmra.mxu0 %v763
        %v807 = vpop.f32.mrf.mxu0
        %v808 = vadd.f32 %v711, %v807
        %v809 = vpop.f32.mrf.mxu0
        %v810 = vadd.f32 %v711, %v809
        %811 = vmatmul.bf16.gmra.mxu0 %v765
        %v812 = vpop.f32.mrf.mxu0
        %v813 = vadd.f32 %v711, %v812
        %v814 = vpop.f32.mrf.mxu0
        %v815 = vadd.f32 %v711, %v814
        %816 = vmatmul.bf16.gmra.mxu0 %v767
        %v817 = vpop.f32.mrf.mxu0
        %v818 = vadd.f32 %v711, %v817
        %v819 = vpop.f32.mrf.mxu0
        %v820 = vadd.f32 %v711, %v819
        %821 = vmatmul.bf16.gmra.mxu0 %v769
        %v822 = vpop.f32.mrf.mxu0
        %v823 = vadd.f32 %v711, %v822
        %v824 = vpop.f32.mrf.mxu0
        %v825 = vadd.f32 %v711, %v824
        %826 = vmatmul.bf16.gmra.mxu0 %v771
        %v827 = vpop.f32.mrf.mxu0
        %v828 = vadd.f32 %v711, %v827
        %v829 = vpop.f32.mrf.mxu0
        %v830 = vadd.f32 %v711, %v829
        %831 = vmatmul.bf16.gmra.mxu0 %v773
        %v832 = vpop.f32.mrf.mxu0
        %v833 = vadd.f32 %v711, %v832
        %v834 = vpop.f32.mrf.mxu0
        %v835 = vadd.f32 %v711, %v834
        %836 = vmatmul.bf16.gmra.mxu0 %v775
        %v837 = vpop.f32.mrf.mxu0
        %v838 = vadd.f32 %v711, %v837
        %v839 = vpop.f32.mrf.mxu0
        %v840 = vadd.f32 %v711, %v839
        %841 = vdwg.mxu0
        %842 = vmatpush.bf16.msra.mxu0 %v690
        %843 = vmatpush.bf16.msra.mxu0 %v689
        %844 = vmatpush.bf16.msra.mxu0 %v688
        %845 = vmatpush.bf16.msra.mxu0 %v687
        %846 = vmatpush.bf16.msra.mxu0 %v686
        %847 = vmatpush.bf16.msra.mxu0 %v685
        %848 = vmatpush.bf16.msra.mxu0 %v684
        %849 = vmatpush.bf16.msra.mxu0 %v683
        %850 = vmatmul.bf16.gmra.mxu0 %v762
        %v851 = vpop.f32.mrf.mxu0
        %v852 = vadd.f32 %v803, %v851
        %v853 = vpop.f32.mrf.mxu0
        %v854 = vadd.f32 %v805, %v853
        %855 = vmatmul.bf16.gmra.mxu0 %v764
        %v856 = vpop.f32.mrf.mxu0
        %v857 = vadd.f32 %v808, %v856
        %v858 = vpop.f32.mrf.mxu0
        %v859 = vadd.f32 %v810, %v858
        %860 = vmatmul.bf16.gmra.mxu0 %v766
        %v861 = vpop.f32.mrf.mxu0
        %v862 = vadd.f32 %v813, %v861
        %v863 = vpop.f32.mrf.mxu0
        %v864 = vadd.f32 %v815, %v863
        %865 = vmatmul.bf16.gmra.mxu0 %v768
        %v866 = vpop.f32.mrf.mxu0
        %v867 = vadd.f32 %v818, %v866
        %v868 = vpop.f32.mrf.mxu0
        %v869 = vadd.f32 %v820, %v868
        %870 = vmatmul.bf16.gmra.mxu0 %v770
        %v871 = vpop.f32.mrf.mxu0
        %v872 = vadd.f32 %v823, %v871
        %v873 = vpop.f32.mrf.mxu0
        %v874 = vadd.f32 %v825, %v873
        %875 = vmatmul.bf16.gmra.mxu0 %v772
        %v876 = vpop.f32.mrf.mxu0
        %v877 = vadd.f32 %v828, %v876
        %v878 = vpop.f32.mrf.mxu0
        %v879 = vadd.f32 %v830, %v878
        %880 = vmatmul.bf16.gmra.mxu0 %v774
        %v881 = vpop.f32.mrf.mxu0
        %v882 = vadd.f32 %v833, %v881
        %v883 = vpop.f32.mrf.mxu0
        %v884 = vadd.f32 %v835, %v883
        %885 = vmatmul.bf16.gmra.mxu0 %v776
        %v886 = vpop.f32.mrf.mxu0
        %v887 = vadd.f32 %v838, %v886
        %v888 = vpop.f32.mrf.mxu0
        %v889 = vadd.f32 %v840, %v888
        %890 = vdwg.mxu0
        %v891 = vmax.f32 %v852, 0.0
        %v892 = vmax.f32 %v854, 0.0
        %v893 = vmax.f32 %v857, 0.0
        %v894 = vmax.f32 %v859, 0.0
        %v895 = vmax.f32 %v862, 0.0
        %v896 = vmax.f32 %v864, 0.0
        %v897 = vmax.f32 %v867, 0.0
        %v898 = vmax.f32 %v869, 0.0
        %v899 = vmax.f32 %v872, 0.0
        %v900 = vmax.f32 %v874, 0.0
        %v901 = vmax.f32 %v877, 0.0
        %v902 = vmax.f32 %v879, 0.0
        %v903 = vmax.f32 %v882, 0.0
        %v904 = vmax.f32 %v884, 0.0
        %v905 = vmax.f32 %v887, 0.0
        %v906 = vmax.f32 %v889, 0.0
        %v907 = vadd.f32 %v891, %v693
        %v908 = vadd.f32 %v892, %v694
        %v909 = vadd.f32 %v893, %v695
        %v910 = vadd.f32 %v894, %v696
        %v911 = vadd.f32 %v895, %v697
        %v912 = vadd.f32 %v896, %v698
        %v913 = vadd.f32 %v897, %v699
        %v914 = vadd.f32 %v898, %v700
        %v915 = vadd.f32 %v899, %v701
        %v916 = vadd.f32 %v900, %v702
        %v917 = vadd.f32 %v901, %v703
        %v918 = vadd.f32 %v902, %v704
        %v919 = vadd.f32 %v903, %v705
        %v920 = vadd.f32 %v904, %v706
        %v921 = vadd.f32 %v905, %v707
        %v922 = vadd.f32 %v906, %v708
        %923 = vst [vmem:[%s692] sm:$0xff] %v907
        %924 = vst [vmem:[%s692 + $0x8] sm:$0xff] %v908
        %925 = vst [vmem:[%s692 + $0x10] sm:$0xff] %v909
        %926 = vst [vmem:[%s692 + $0x18] sm:$0xff] %v910
        %927 = vst [vmem:[%s692 + $0x20] sm:$0xff] %v911
        %928 = vst [vmem:[%s692 + $0x28] sm:$0xff] %v912
        %929 = vst [vmem:[%s692 + $0x30] sm:$0xff] %v913
        %930 = vst [vmem:[%s692 + $0x38] sm:$0xff] %v914
        %931 = vst [vmem:[%s692 + $0x40] sm:$0xff] %v915
        %932 = vst [vmem:[%s692 + $0x48] sm:$0xff] %v916
        %933 = vst [vmem:[%s692 + $0x50] sm:$0xff] %v917
        %934 = vst [vmem:[%s692 + $0x58] sm:$0xff] %v918
        %935 = vst [vmem:[%s692 + $0x60] sm:$0xff] %v919
        %936 = vst [vmem:[%s692 + $0x68] sm:$0xff] %v920
        %937 = vst [vmem:[%s692 + $0x70] sm:$0xff] %v921
        %938 = vst [vmem:[%s692 + $0x78] sm:$0xff] %v922
        %939 = vst [vmem:[%s318] sm:$0xff] %v907
        %940 = vst [vmem:[%s318 + $0x8] sm:$0xff] %v908
        %941 = vst [vmem:[%s318 + $0x10] sm:$0xff] %v909
        %942 = vst [vmem:[%s318 + $0x18] sm:$0xff] %v910
        %943 = vst [vmem:[%s318 + $0x20] sm:$0xff] %v911
        %944 = vst [vmem:[%s318 + $0x28] sm:$0xff] %v912
        %945 = vst [vmem:[%s318 + $0x30] sm:$0xff] %v913
        %946 = vst [vmem:[%s318 + $0x38] sm:$0xff] %v914
        %947 = vst [vmem:[%s318 + $0x40] sm:$0xff] %v915
        %948 = vst [vmem:[%s318 + $0x48] sm:$0xff] %v916
        %949 = vst [vmem:[%s318 + $0x50] sm:$0xff] %v917
        %950 = vst [vmem:[%s318 + $0x58] sm:$0xff] %v918
        %951 = vst [vmem:[%s318 + $0x60] sm:$0xff] %v919
        %952 = vst [vmem:[%s318 + $0x68] sm:$0xff] %v920
        %953 = vst [vmem:[%s318 + $0x70] sm:$0xff] %v921
        %954 = vst [vmem:[%s318 + $0x78] sm:$0xff] %v922
        %s955 = sand.u32 %s141, 1
        %s956 = scalar_lea.sflag [#allocation6], %s955
        %s957 = sand.u32 %s141, 1
        %s958 = smul.addr %s957, 128
        %s959 = scalar_lea.vmem [#allocation11], %s958
        // Predicated region
        $region61: #{tpu_custom_call.1} parent=35 // pred_check
          %p960 = pneg %p151
        $region62: #{tpu_custom_call.1} parent=35 // pred_check_branch
          %962 = sbr.rel (%p960) target = $region64
        $region63: #{tpu_custom_call.1} parent=35 // pred_region
          %s963 = smul.u32 16, %s27
          %965 = vsyncadd %s956, 0
          %s966 = smul.addr %s963, 8
          %s967 = scalar_lea.hbm %s4, %s966
          %s968 = sshll.u32 %s959, 4
          %s969 = int_to_ptr.vmem [resolvable:$true] %s968
          %s970 = sshll.u32 %s967, 4
          %s971 = int_to_ptr.hbm [resolvable:$true] %s970
          %976 = dma.vmem_to_hbm [thread:$0]  %s969, 2048, %s971, %s956, 128, 128, 8
        $region64: #{tpu_custom_call.1} parent=35 // pred_fallthru
          _
      $region36: #{tpu_custom_call.1} parent=5 // pred_fallthru
        _
      %p977 = scmp.le.s32.totalorder 2, %s17
      // Predicated region
      $region65: #{tpu_custom_call.1} parent=5 // pred_check
        %p978 = pneg %p977
      $region66: #{tpu_custom_call.1} parent=5 // pred_check_branch
        %980 = sbr.rel (%p978) target = $region68
      $region67: #{tpu_custom_call.1} parent=5 // pred_region
        %s981 = ssub.s32 %s17, 2
        // Predicated region
        $region69: #{tpu_custom_call.1} parent=67 // pred_check
          %p982 = pneg %p157
        $region70: #{tpu_custom_call.1} parent=67 // pred_check_branch
          %984 = sbr.rel (%p982) target = $region72
        $region71: #{tpu_custom_call.1} parent=67 // pred_region
          %s985 = sand.u32 %s142, 1
          %s986 = scalar_lea.sflag [#allocation6], %s985
          %s987 = sand.u32 %s142, 1
          %s988 = smul.addr %s987, 128
          %s989 = scalar_lea.vmem [#allocation11], %s988
          %991 = dma.done %s986, 2048
        $region72: #{tpu_custom_call.1} parent=67 // pred_fallthru
          _
      $region68: #{tpu_custom_call.1} parent=5 // pred_fallthru
        _
    $region6: #{tpu_custom_call.1} parent=1 // loop_footer
      %s21 = sadd.s32 1, %s17
    $region7: #{tpu_custom_call.1} parent=1 // loop_footer_branch
      %16 = sbr.rel target = $region3
    $region8: #{tpu_custom_call.1} parent=1 // loop_exit
      _
    %992 = vsyncpa [#allocation5], 1
    %s993 = scalar_lea.sflag [#allocation5], 1
    %994 = vsyncpa %s993, 1
    %995 = vsyncpa [#allocation8], 1
    %996 = vsyncpa [#allocation6], 1
    %s997 = scalar_lea.sflag [#allocation6], 1
    %998 = vsyncpa %s997, 1

</llo_original>
